<compile_context>
chip_gen: v7x
topology: tpu7x:2x2x1
jax: 0.10.0
libtpu: 0.0.40
codegen_flags: <defaults>
</compile_context>

<pallas_src>
import string as _string

import numpy as np
import jax
import jax.numpy as jnp
from jax import lax
from jax.experimental import pallas as pl
from jax.experimental.pallas import tpu as pltpu


OUT_L = 128  # lane-dense int32 output slab; host reads column 0.


# ----------------------------------------------------------------------------
# Kernel 1: batched plain argmax over the label (lane) axis, lane-dense output.
# ----------------------------------------------------------------------------
def _pick_row_tile(T, max_tile=1024):
    """Largest divisor tile <= max_tile that still leaves >= 2 grid steps
    (keeps v7x's second TensorCore busy); falls back to the full extent."""
    for cand in (1024, 512, 256, 128, 64, 32, 16, 8):
        if cand <= max_tile and cand < T and T % cand == 0:
            return cand
    return T


def argmax_lanes(emission, *, max_rows_per_tile=1024):
    """emission: (T, L) float32 -> (T,) int32 first-index argmax per row."""
    T, L = emission.shape
    tile = _pick_row_tile(T, max_rows_per_tile)

    def kernel(e_ref, idx_ref):
        e = e_ref[...].astype(jnp.float32)
        lane = lax.broadcasted_iota(jnp.int32, e.shape, 1)
        m = jnp.max(e, axis=-1, keepdims=True)
        idx = jnp.min(jnp.where(e == m, lane, L), axis=-1, keepdims=True)
        idx_ref[...] = jnp.broadcast_to(idx, idx_ref.shape)

    out = pl.pallas_call(
        kernel,
        out_shape=jax.ShapeDtypeStruct((T, OUT_L), jnp.int32),
        grid=(T // tile,),
        in_specs=[pl.BlockSpec((tile, L), lambda i: (i, 0))],
        out_specs=pl.BlockSpec((tile, OUT_L), lambda i: (i, 0)),
        compiler_params=pltpu.CompilerParams(
            dimension_semantics=("parallel",)),   # 2x on v7x (2 TCs/chip)
    )(emission)
    return out[:, 0]


# ----------------------------------------------------------------------------
# Kernel 2: fused sequential greedy decode (single launch, chunked over T).
# ----------------------------------------------------------------------------
def _pick_chunk(T, max_chunk=512):
    for cand in (512, 256, 128, 64, 32, 16, 8):
        if cand <= max_chunk and cand <= T and T % cand == 0:
            return cand
    return T


def ctc_greedy_decode(emission, prior_tab, next_flat, *, blank):
    """Run the full greedy tree-prior decode on device.

    emission:  (T, L)        float32
    prior_tab: (S_pad, L)    float32  prior[state, label]   (VMEM-resident)
    next_flat: (S_pad * L,)  int32    next_state[state, label] flat (SMEM)
    Returns (T,) int32 — per-timestep mixed-argmax label index.
    """
    T, L = emission.shape
    S_pad = prior_tab.shape[0]
    chunk = _pick_chunk(T)
    unroll_small = chunk <= 64

    def kernel(next_ref, e_ref, prior_ref, out_ref,
               e06_ref, idx_sc, walk_ref, pend_ref):
        # Carried decode state lives in SMEM scratch and persists across the
        # T-chunk grid axis; initialize on the first chunk only.
        @pl.when(pl.program_id(0) == 0)
        def _():
            walk_ref[0] = jnp.int32(0)    # state 0 == tree root
            pend_ref[0] = jnp.int32(-1)   # -1 == no pending char yet

        # Pre-scale the whole emission chunk once (off the serial chain).
        e06_ref[...] = e_ref[...].astype(jnp.float32) * 0.6

        lane_row = lax.broadcasted_iota(jnp.int32, (1, L), 1)

        def step(t, carry):
            walk = walk_ref[0]            # scalar (SMEM)
            pending = pend_ref[0]         # scalar (SMEM)

            # prior_tab[walk, :] — O(1) dynamic sublane slice from a scalar.
            prow = prior_ref[pl.ds(walk, 1), :]                      # (1, L)

            # Mixed greedy decision (first-index argmax tie-break).
            mixed = e06_ref[pl.ds(t, 1), :] + prow * 0.4             # (1, L)
            m = jnp.max(mixed, axis=-1, keepdims=True)
            idx_v = jnp.min(jnp.where(mixed == m, lane_row, L),
                            axis=-1, keepdims=True)                  # (1, 1)
            idx_v = jnp.minimum(idx_v, L - 1)   # all-NaN guard: never OOB

            # Lane-dense per-step output row (host reads column 0).
            out_ref[pl.ds(t, 1), :] = jnp.broadcast_to(idx_v, (1, OUT_L))

            # Single vector->scalar hop per step: bounce the (1,1) argmax
            # through VMEM scratch and read it back as a scalar.
            idx_sc[...] = idx_v
            idx = idx_sc[0, 0]

            # next_state[walk, pending] — O(1) scalar SMEM gather.  pending is
            # clamped so -1 never aliases a neighbouring row; the gathered
            # value is discarded by `advance` in that case anyway.
            nxt = next_ref[walk * L + jnp.maximum(pending, 0)]

            # State update (matches the reference walk over oute[:-1]):
            # a non-blank char advances the walk by the PREVIOUS pending char,
            # then the new char becomes pending.
            nonblank = idx != blank
            advance = jnp.logical_and(nonblank, pending >= 0)
            walk_ref[0] = jnp.where(advance, nxt, walk)
            pend_ref[0] = jnp.where(nonblank, idx, pending)
            return carry

        if unroll_small:
            lax.fori_loop(0, chunk, step, jnp.int32(0), unroll=True)
        else:
            lax.fori_loop(0, chunk, step, jnp.int32(0))

    out = pl.pallas_call(
        kernel,
        out_shape=jax.ShapeDtypeStruct((T, OUT_L), jnp.int32),
        grid_spec=pltpu.PrefetchScalarGridSpec(
            num_scalar_prefetch=1,                       # next-state -> SMEM
            grid=(T // chunk,),
            in_specs=[pl.BlockSpec((chunk, L), lambda i, nf: (i, 0)),
                      pl.BlockSpec((S_pad, L), lambda i, nf: (0, 0))],
            out_specs=pl.BlockSpec((chunk, OUT_L), lambda i, nf: (i, 0)),
            scratch_shapes=[pltpu.VMEM((chunk, L), jnp.float32),  # e * 0.6
                            pltpu.VMEM((1, 1), jnp.int32),        # idx bounce
                            pltpu.SMEM((1,), jnp.int32),          # walk
                            pltpu.SMEM((1,), jnp.int32)]),        # pending
        compiler_params=pltpu.CompilerParams(
            dimension_semantics=("arbitrary",)),   # inherently sequential
    )(next_flat, emission, prior_tab)
    return out[:, 0]


# ----------------------------------------------------------------------------
# Host-side tree (glue): deterministic synthetic prefix tree with counts.
# ----------------------------------------------------------------------------
class Node:
    def __init__(self, data, child=None):
        self.parent = None
        self.child = []
        if child is not None:
            self.child.append(child)
        if data is not None:
            self.data = data

    def find(self, char):
        done, stt = 0, -1
        for j, i in enumerate(self.child):
            key = list(i.data.keys())[0]
            if key == char:
                done, stt = 1, j
        return (done == 1, stt)

    def list_child(self, labels):
        out = np.zeros((1, len(labels)), dtype=np.float32)
        for i in self.child:
            key = list(i.data.keys())[0]
            stt = np.where(labels == key)[0]
            if stt.size:
                out[0, stt[0]] = float(list(i.data.values())[0])
        return out


def list_cha(stri, root, labels):
    try:
        for ch in stri[:-1]:
            found, pos = root.find(ch)
            if not found:
                raise KeyError(ch)
            root = root.child[pos]
        num = root.list_child(labels)
    except Exception:
        num = np.zeros((1, len(labels)), dtype=np.float32)
    return num


def build_synthetic_tree():
    root = Node({'begin': 0})
    for ch, cnt in [('h', 5), ('e', 3), ('l', 4), ('o', 2), ('a', 1)]:
        root.child.append(Node({ch: cnt}))
    # second level under 'h' and 'e'
    root.child[0].child.append(Node({'e': 6}))
    root.child[0].child.append(Node({'i': 2}))
    root.child[1].child.append(Node({'l': 7}))
    return root


def flatten_tree(root, labels):
    """Flatten the prefix tree into dense decode tables (done once, on host).

    Returns:
      prior: (S_pad, L) float32, prior[s, j] = count of child of node s whose
             key == labels[j] (0 otherwise; dead/padding rows are all-zero).
      nxt:   (S_pad, L) int32, next-state id (DEAD if no matching child).
      n_states: number of meaningful states (real nodes + DEAD) <= S_pad.
    """
    L = len(labels)
    label_to_idx = {str(l): i for i, l in enumerate(labels)}
    nodes = []

    def visit(n):
        nodes.append(n)
        for c in n.child:
            visit(c)

    visit(root)                       # node 0 == root
    n_real = len(nodes)
    dead = n_real                     # absorbing "walk failed" state, zero prior
    n_states = n_real + 1
    s_pad = max(8, -(-n_states // 8) * 8)

    prior = np.zeros((s_pad, L), np.float32)
    nxt = np.full((s_pad, L), dead, np.int32)
    node_id = {id(n): i for i, n in enumerate(nodes)}
    for i, n in enumerate(nodes):
        for c in n.child:
            key = str(list(c.data.keys())[0])
            if key in label_to_idx:
                j = label_to_idx[key]
                prior[i, j] = float(list(c.data.values())[0])
                nxt[i, j] = node_id[id(c)]
    return prior, nxt, n_states


# ----------------------------------------------------------------------------
# GreedyCTCDecoder forward (JAX + Pallas version).
# ----------------------------------------------------------------------------
class GreedyCTCDecoderPallas:
    def __init__(self, labels, tree, blank=0):
        self.labels = np.asarray(labels)       # np.array of single-char strings
        self.tree = tree
        self.blank = int(blank)
        prior, nxt, n_states = flatten_tree(tree, self.labels)
        self.n_states = n_states
        self.prior_tab = jnp.asarray(prior)                  # (S_pad, L) f32
        self.next_flat = jnp.asarray(nxt.reshape(-1))        # (S_pad*L,) i32

    def forward(self, emission, to_string=True):
        # emission: jnp.float32 [num_seq, num_label]
        if not to_string:
            return argmax_lanes(emission)                    # (num_seq,) int32

        steps = ctc_greedy_decode(emission, self.prior_tab, self.next_flat,
                                  blank=self.blank)
        steps = np.asarray(jax.device_get(steps))            # ONE host sync
        return ''.join(str(self.labels[int(i)])
                       for i in steps if int(i) != self.blank)


# ----------------------------------------------------------------------------
# Pure-numpy reference (same semantics) for verification.
# ----------------------------------------------------------------------------
def reference_forward(emission_np, labels, tree, blank=0):
    index = np.argmax(emission_np, axis=-1)
    oute = ''
    for row in emission_np:
        list_num = list_cha(oute, tree, labels)           # (1, N)
        mixed = row[None, :] * 0.6 + list_num * 0.4
        idx = int(np.argmax(mixed, axis=-1)[0])
        if idx != blank:
            oute += str(labels[idx])
    return oute, index


if __name__ == "__main__":
    num_seq, num_label = 8, 32
    labels = np.array(['-'] + list(_string.ascii_lowercase) + list('01234'))
    assert len(labels) == num_label

    tree = build_synthetic_tree()

    key = jax.random.PRNGKey(0)
    emission = jax.random.normal(key, (num_seq, num_label), dtype=jnp.float32)
    emission_np = np.asarray(emission)

    decoder = GreedyCTCDecoderPallas(labels, tree, blank=0)

    # to_string=False path (batched, row-parallel Pallas argmax)
    index = decoder.forward(emission, to_string=False)
    index = jax.block_until_ready(index)

    # to_string=True path (single fused Pallas decode kernel + one host sync)
    transcript = decoder.forward(emission, to_string=True)

    ref_transcript, ref_index = reference_forward(emission_np, labels, tree, 0)

    assert np.array_equal(np.asarray(index), ref_index.astype(np.int32)), \
        f"index mismatch: {np.asarray(index)} vs {ref_index}"
    assert transcript == ref_transcript, \
        f"transcript mismatch: {transcript!r} vs {ref_transcript!r}"

    print("KERNEL_OK")
</pallas_src>

<mosaic_0001>
module attributes {stable_mosaic.version = 11 : i64} {
  func.func @kernel(%arg0: i32, %arg1: memref<8x32xf32, #tpu.memory_space<vmem>>, %arg2: memref<8x128xi32, #tpu.memory_space<vmem>>) attributes {dimension_semantics = [#tpu.dimension_semantics<parallel>], iteration_bounds = array<i64: 1>, scalar_prefetch = 0 : i64, scratch_operands = 0 : i64, tpu.core_type = #tpu.core_type<tc>, window_params = [{transform_indices = @transform_0, window_bounds = array<i64: 8, 32>}, {transform_indices = @transform_1, window_bounds = array<i64: 8, 128>}]} {
    %c0 = arith.constant 0 : index
    %c0_0 = arith.constant 0 : index
    %0 = vector.load %arg1[%c0, %c0_0] : memref<8x32xf32, #tpu.memory_space<vmem>>, vector<8x32xf32>
    %1 = tpu.iota {dimensions = array<i32: 1>} : vector<8x32xi32>
    %cst = arith.constant dense<0xFF800000> : vector<8xf32>
    %2 = vector.multi_reduction <maximumf>, %0, %cst [1] : vector<8x32xf32> to vector<8xf32>
    %3 = vector.shape_cast %2 : vector<8xf32> to vector<8x1xf32>
    %4 = vector.broadcast %3 : vector<8x1xf32> to vector<8x32xf32>
    %5 = arith.cmpf oeq, %0, %4 : vector<8x32xf32>
    %c32_i32 = arith.constant 32 : i32
    %6 = vector.broadcast %c32_i32 : i32 to vector<8x32xi32>
    %7 = arith.select %5, %1, %6 : vector<8x32xi1>, vector<8x32xi32>
    %cst_1 = arith.constant dense<2147483647> : vector<8xi32>
    %8 = vector.multi_reduction <minsi>, %7, %cst_1 [1] : vector<8x32xi32> to vector<8xi32>
    %9 = vector.shape_cast %8 : vector<8xi32> to vector<8x1xi32>
    %10 = vector.shape_cast %9 : vector<8x1xi32> to vector<8x1xi32>
    %11 = vector.broadcast %10 : vector<8x1xi32> to vector<8x128xi32>
    %c0_2 = arith.constant 0 : index
    %c0_3 = arith.constant 0 : index
    %12 = vector.load %arg2[%c0_2, %c0_3] : memref<8x128xi32, #tpu.memory_space<vmem>>, vector<8x128xi32>
    tpu.vector_store %arg2[%c0_2, %c0_3], %11 {strides = array<i32>} : memref<8x128xi32, #tpu.memory_space<vmem>>, vector<8x128xi32>,
    return
  }
  func.func @transform_0(%arg0: i32) -> (i32, i32) {
    %c0_i32 = arith.constant 0 : i32
    %c0_i32_0 = arith.constant 0 : i32
    return %arg0, %c0_i32 : i32, i32
  }
  func.func @transform_1(%arg0: i32) -> (i32, i32) {
    %c0_i32 = arith.constant 0 : i32
    %c0_i32_0 = arith.constant 0 : i32
    return %arg0, %c0_i32 : i32, i32
  }
}

</mosaic_0001>

<llo_original>
// kernel: tpu_custom_call.1
$region0: #{tpu_custom_call.1}
  #allocation0 [shape = 'u32[]', space=smem, size = 0x4, offset = 0x4, fixed_abs, tag = 'smem constant byte address 0x4 - core index']
  #allocation1 [shape = 'u32[144,128]{1,0:T(1,128)}', space=vmem, size = 0x12000, scoped, tag = 'internal scratch']
  %s0 = inlined_call_operand.hbm [shape: f32[8,32], index: 0, kind: input, shape index: {}]
  %s1 = inlined_call_operand.hbm [shape: s32[8,128], index: 1, kind: output, shape index: {}]
  %s2 = sld [smem:[#allocation0]]
  $region18: #{tpu_custom_call.1} parent=0
    _
  %s4 = ssub.s32 1, %s2
  %s5 = scalar_select 0, %s4, %s2
  $region1: #{tpu_custom_call.1} parent=0
    #allocation2 [shape = 'u8[4096]{0}', space=vmem, size = 0x1000, scoped, tag = 'input window, operand 0, single buffered']
    #allocation3 [shape = 's32[1]{0}', space=sflag, size = 0x4, scoped, tag = 'scoped memory for tpu_custom_call.1']
    #allocation4 [shape = 's32[1]{0}', space=sflag, size = 0x4, scoped, tag = 'scoped memory for tpu_custom_call.1']
    #allocation5 [shape = 'u8[4096]{0}', space=vmem, size = 0x1000, scoped, tag = 'output window, operand 0, single buffered']
    %6 = vsyncpa [#allocation3], 0
    %7 = vsyncpa [#allocation4], 0
    // Predicated region
    $region2: #{tpu_custom_call.1} parent=1 // pred_check
      _
    $region3: #{tpu_custom_call.1} parent=1 // pred_check_branch
      %9 = sbr.rel (0) target = $region5
    $region4: #{tpu_custom_call.1} parent=1 // pred_region
      %s11 = ssub.s32 128, 128
      %12 = vsyncadd [#allocation3], %s11
      %s14 = sshll.u32 [#allocation2], 4
      %s15 = int_to_ptr.vmem [resolvable:$true] %s14
      %17 = dma.hbm_to_vmem [thread:$0]  %s0, 128, %s15, [#allocation3]
    $region5: #{tpu_custom_call.1} parent=1 // pred_fallthru
      _
    // Predicated region
    $region6: #{tpu_custom_call.1} parent=1 // pred_check
      _
    $region7: #{tpu_custom_call.1} parent=1 // pred_check_branch
      %19 = sbr.rel (0) target = $region9
    $region8: #{tpu_custom_call.1} parent=1 // pred_region
      %20 = dma.done [#allocation3], 128
    $region9: #{tpu_custom_call.1} parent=1 // pred_fallthru
      _
    %v21 = vld [vmem:[#allocation2] sm:$0xff]
    %v22 = vlaneseq
    %v23 = vand.u32 %v22, 127
    %vm24 = vcmask 261120
    %v25 = vsel %vm24, %v21, -inf
    %26 = vmax.xlane.f32.xlu0 %v25
    %v27 = vpop.xlane.xlu0 %26
    %vm28 = vcmp.eq.f32.partialorder %v21, %v27
    %v29 = vsel %vm28, %v23, 32
    %v30 = vsel %vm24, %v29, 2147483647
    %v31 = vand.u32 %v30, 65535
    %v32 = vshra.s32 %v30, 16
    %v33 = vcvt.s32.f32 %v31
    %v34 = vcvt.s32.f32 %v32
    %35 = vmin.xlane.f32.xlu0 %v34
    %v36 = vpop.xlane.xlu0 %35
    %vm37 = vcmp.eq.f32.partialorder %v34, %v36
    %v38 = vsel %vm37, %v33, inf
    %39 = vmin.xlane.f32.xlu0 %v38
    %v40 = vpop.xlane.xlu0 %39
    %v41 = vcvt.f32.s32 %v40
    %v42 = vcvt.f32.s32 %v36
    %v43 = vshll.u32 %v42, 16
    %v44 = vadd.s32 %v43, %v41
    %45 = vst [vmem:[#allocation5] sm:$0xff] %v44
    // Predicated region
    $region10: #{tpu_custom_call.1} parent=1 // pred_check
      _
    $region11: #{tpu_custom_call.1} parent=1 // pred_check_branch
      %47 = sbr.rel (0) target = $region13
    $region12: #{tpu_custom_call.1} parent=1 // pred_region
      %s49 = ssub.s32 128, 128
      %50 = vsyncadd [#allocation4], %s49
      %s52 = sshll.u32 [#allocation5], 4
      %s53 = int_to_ptr.vmem [resolvable:$true] %s52
      %55 = dma.vmem_to_hbm [thread:$0]  %s53, 128, %s1, [#allocation4]
    $region13: #{tpu_custom_call.1} parent=1 // pred_fallthru
      _
    // Predicated region
    $region14: #{tpu_custom_call.1} parent=1 // pred_check
      _
    $region15: #{tpu_custom_call.1} parent=1 // pred_check_branch
      %57 = sbr.rel (0) target = $region17
    $region16: #{tpu_custom_call.1} parent=1 // pred_region
      %58 = dma.done [#allocation4], 128
    $region17: #{tpu_custom_call.1} parent=1 // pred_fallthru
      _
    %59 = vsyncpa [#allocation3], 1
    %60 = vsyncpa [#allocation4], 1

</llo_original>
